<compile_context>
chip_gen: v7x
topology: tpu7x:2x2x1
jax: 0.10.0
libtpu: 0.0.40
codegen_flags: <defaults>
</compile_context>

<pallas_src>
import jax
import jax.numpy as jnp
import numpy as np
from jax.experimental import pallas as pl
from jax.experimental.pallas import tpu as pltpu

# --- hyperparameters (stand-ins for parameters_ctc) ---------------------
INPUT_FEAT_DIM = 32        # input_feat_dim
HIDDEN_DIM = 32            # parameters_ctc['hidden_layer_1_dim']
WORD_DIM = 16              # parameters_ctc['word_dim']
TARGET_LABEL_DIM = 5       # target_label_dim
VOCAB_SIZE = 50            # vocab_size
BATCH = 8

LANES = 128                # lane-dense padded width for every operand
ID_LANE = INPUT_FEAT_DIM   # lane of the activation slab carrying word_id
EMB_OFF = HIDDEN_DIM       # one-hot lanes start right after h's lanes
NEG_BIG = -1e30            # bias for padded label lanes (exp -> exactly 0)

# packed weight slab row offsets (all multiples of 8 -> tile-aligned views)
R_W1 = 0                   # rows   0..127 : W1^T padded to [128,128]
R_B1 = 128                 # row  128      : b1 (lanes 0..H-1)
R_W3 = 136                 # rows 136..263 : combined layer-3 weight [128,128]
R_B3 = 264                 # row  264      : b3 (+NEG_BIG in padded lanes)
ROWS = 272

assert EMB_OFF + VOCAB_SIZE <= LANES
assert ID_LANE >= INPUT_FEAT_DIM and ID_LANE < LANES


def _classifier_kernel(x_ref, w_ref, out_ref):
    x = x_ref[...]                                            # [B, 128]
    b = x.shape[0]
    lane = jax.lax.broadcasted_iota(jnp.int32, (b, LANES), 1)

    # word ids ride as exact small floats in lane ID_LANE of the slab
    ids = x[:, ID_LANE:ID_LANE + 1].astype(jnp.int32)         # [B, 1]

    # zero everything past the real feature lanes before the MXU pass
    x_feat = jnp.where(lane < INPUT_FEAT_DIM, x, 0.0)

    # ---- Linear_Layer_1 + Tanh (padded lanes of h stay exactly 0) -------
    w1 = w_ref[R_W1:R_W1 + LANES, :]                          # [128,128]
    b1 = w_ref[R_B1:R_B1 + 1, :]                              # [1,128]
    h = jnp.tanh(
        jnp.dot(x_feat, w1, preferred_element_type=jnp.float32) + b1
    )                                                         # [B,128]

    # ---- Embedding lookup fused as a shifted one-hot; concat folded ------
    # lanes 0..H-1 hold h, lanes H..H+V-1 hold onehot(word_id)
    onehot = (lane == ids + EMB_OFF).astype(jnp.float32)      # [B,128]
    cat = h + onehot

    # ---- Linear_Layer_3: single MXU pass over the combined weight --------
    # rows 0..H-1 = W3h^T, rows H..H+V-1 = Embed @ W3e^T (embedding folded)
    w3 = w_ref[R_W3:R_W3 + LANES, :]                          # [128,128]
    b3 = w_ref[R_B3:R_B3 + 1, :]                              # [1,128]
    logits = jnp.dot(cat, w3, preferred_element_type=jnp.float32) + b3

    # ---- Softmax(dim=1), numerically stabilized; padded lanes -> 0 -------
    m = jnp.max(logits, axis=1, keepdims=True)
    e = jnp.exp(logits - m)
    s = jnp.sum(e, axis=1, keepdims=True)
    scores = e * pl.reciprocal(s, approx=False)               # exact

    # ---- argmax (first-max tie-break); padded lanes can never win --------
    pred = jnp.min(
        jnp.where(logits == m, lane, jnp.int32(LANES)), axis=1, keepdims=True
    ).astype(jnp.float32)                                     # [B,1], exact ints

    # stash prediction in padded score lane T; single lane-dense store
    out_ref[...] = jnp.where(lane == TARGET_LABEL_DIM, pred, scores)


def prepack_params(params):
    """One-time weight prep: fold embedding through W3, pack everything into
    one lane-padded [272, 128] f32 slab with 8-sublane-aligned row groups."""
    w1_t = params["w1"].T                                     # [F, H]
    w3 = params["w3"]                                         # [T, WD + H]
    w3e_t = w3[:, :WORD_DIM].T                                # [WD, T] (emb cols)
    w3h_t = w3[:, WORD_DIM:].T                                # [H, T]
    ew3e = params["embed"] @ w3e_t                            # [V, T]  fold

    slab = jnp.zeros((ROWS, LANES), jnp.float32)
    slab = slab.at[R_W1:R_W1 + INPUT_FEAT_DIM, :HIDDEN_DIM].set(w1_t)
    slab = slab.at[R_B1, :HIDDEN_DIM].set(params["b1"])
    slab = slab.at[R_W3:R_W3 + HIDDEN_DIM, :TARGET_LABEL_DIM].set(w3h_t)
    slab = slab.at[R_W3 + EMB_OFF:R_W3 + EMB_OFF + VOCAB_SIZE,
                   :TARGET_LABEL_DIM].set(ew3e)
    slab = slab.at[R_B3, :].set(NEG_BIG)
    slab = slab.at[R_B3, :TARGET_LABEL_DIM].set(params["b3"])
    return slab


@jax.jit
def neural_classifier_forward(features, word_ids, packed_w):
    """features: [B, F] f32, word_ids: [B] int, packed_w: [272,128] f32.
    Returns (scores [B, T], preds [B] int32)."""
    B = features.shape[0]
    # fold word_ids into the activation slab (ids 0..V-1 are exact in f32)
    ids_f = word_ids.astype(jnp.float32)
    x = jnp.zeros((B, LANES), jnp.float32)
    x = x.at[:, :INPUT_FEAT_DIM].set(features).at[:, ID_LANE].set(ids_f)

    out = pl.pallas_call(
        _classifier_kernel,
        out_shape=jax.ShapeDtypeStruct((B, LANES), jnp.float32),
        in_specs=[
            pl.BlockSpec(memory_space=pltpu.MemorySpace.VMEM),  # activation slab
            pl.BlockSpec(memory_space=pltpu.MemorySpace.VMEM),  # packed weights
        ],
        out_specs=pl.BlockSpec(memory_space=pltpu.MemorySpace.VMEM),
        # NOTE: grid-less (single TensorCore). Only add a "parallel" batch
        # grid axis if batch grows to throughput scale (v7x dual-TC).
    )(x, packed_w)

    scores = out[:, :TARGET_LABEL_DIM]
    preds = out[:, TARGET_LABEL_DIM].astype(jnp.int32)
    return scores, preds


def init_params(key):
    k1, k2, k3, k4, k5 = jax.random.split(key, 5)
    # Deterministic synthetic parameters (shapes match torch.nn.Linear / Embedding).
    w1 = jax.random.normal(k1, (HIDDEN_DIM, INPUT_FEAT_DIM), jnp.float32) * 0.1
    b1 = jax.random.normal(k2, (HIDDEN_DIM,), jnp.float32) * 0.1
    w3 = jax.random.normal(k3, (TARGET_LABEL_DIM, WORD_DIM + HIDDEN_DIM),
                           jnp.float32) * 0.1
    b3 = jax.random.normal(k4, (TARGET_LABEL_DIM,), jnp.float32) * 0.1
    embed = jax.random.normal(k5, (VOCAB_SIZE, WORD_DIM), jnp.float32) * 0.1
    return {"w1": w1, "b1": b1, "w3": w3, "b3": b3, "embed": embed}


def _reference(features, word_ids, params):
    # Pure-JAX reference mirroring the PyTorch forward exactly.
    h = jnp.tanh(features @ params["w1"].T + params["b1"])
    emb = jnp.take(params["embed"], word_ids, axis=0)
    cat = jnp.concatenate([emb, h], axis=1)
    logits = cat @ params["w3"].T + params["b3"]
    return jax.nn.softmax(logits, axis=1)


if __name__ == "__main__":
    key = jax.random.PRNGKey(0)
    kp, kf, kw = jax.random.split(key, 3)

    params = init_params(kp)
    packed = prepack_params(params)          # one-time weight prep (not per call)

    features = jax.random.normal(kf, (BATCH, INPUT_FEAT_DIM), jnp.float32)
    word_ids = jax.random.randint(kw, (BATCH,), 0, VOCAB_SIZE, jnp.int32)

    scores, preds = neural_classifier_forward(features, word_ids, packed)
    scores = jax.block_until_ready(scores)
    preds = jax.block_until_ready(preds)

    ref = _reference(features, word_ids, params)
    np.testing.assert_allclose(np.asarray(scores), np.asarray(ref),
                               rtol=1e-5, atol=1e-5)
    assert np.array_equal(np.asarray(preds), np.argmax(np.asarray(ref), axis=1))

    # TODO(synk): CrossEntropy loss and the host-side numpy prediction list of
    # the torch module are training/host glue, not part of the device forward.
    print("KERNEL_OK")
</pallas_src>

<mosaic_0001>
module attributes {stable_mosaic.version = 11 : i64} {
  func.func @_classifier_kernel(%arg0: memref<8x128xf32, #tpu.memory_space<vmem>>, %arg1: memref<272x128xf32, #tpu.memory_space<vmem>>, %arg2: memref<8x128xf32, #tpu.memory_space<vmem>>) attributes {dimension_semantics = [], scalar_prefetch = 0 : i64, scratch_operands = 0 : i64, tpu.core_type = #tpu.core_type<tc>} {
    %c0 = arith.constant 0 : index
    %c0_0 = arith.constant 0 : index
    %0 = vector.load %arg0[%c0, %c0_0] : memref<8x128xf32, #tpu.memory_space<vmem>>, vector<8x128xf32>
    %1 = tpu.iota {dimensions = array<i32: 1>} : vector<8x128xi32>
    %2 = vector.extract_strided_slice %0 {offsets = [0, 32], sizes = [8, 1], strides = [1, 1]} : vector<8x128xf32> to vector<8x1xf32>
    %3 = arith.fptosi %2 : vector<8x1xf32> to vector<8x1xi32>
    %c32_i32 = arith.constant 32 : i32
    %4 = vector.broadcast %c32_i32 : i32 to vector<8x128xi32>
    %5 = arith.cmpi slt, %1, %4 : vector<8x128xi32>
    %cst = arith.constant 0.000000e+00 : f32
    %6 = vector.broadcast %cst : f32 to vector<8x128xf32>
    %7 = arith.select %5, %0, %6 : vector<8x128xi1>, vector<8x128xf32>
    %c0_1 = arith.constant 0 : index
    %c0_2 = arith.constant 0 : index
    %8 = vector.load %arg1[%c0_1, %c0_2] : memref<272x128xf32, #tpu.memory_space<vmem>>, vector<128x128xf32>
    %c128 = arith.constant 128 : index
    %c0_3 = arith.constant 0 : index
    %9 = vector.load %arg1[%c128, %c0_3] : memref<272x128xf32, #tpu.memory_space<vmem>>, vector<1x128xf32>
    %cst_4 = arith.constant dense<0.000000e+00> : vector<8x128xf32>
    %10 = tpu.matmul %7, %8, %cst_4 {dimension_numbers = #tpu.dot_dimension_numbers<[1], [0], [0], [1], [0, 0, 1, 1], [], []>} : vector<8x128xf32>, vector<128x128xf32>, vector<8x128xf32> -> vector<8x128xf32>
    %11 = vector.broadcast %9 : vector<1x128xf32> to vector<8x128xf32>
    %12 = arith.addf %10, %11 : vector<8x128xf32>
    %13 = math.tanh %12 : vector<8x128xf32>
    %c32_i32_5 = arith.constant 32 : i32
    %14 = vector.broadcast %c32_i32_5 : i32 to vector<8x1xi32>
    %15 = arith.addi %3, %14 : vector<8x1xi32>
    %16 = vector.broadcast %15 : vector<8x1xi32> to vector<8x128xi32>
    %17 = arith.cmpi eq, %1, %16 : vector<8x128xi32>
    %18 = arith.extui %17 : vector<8x128xi1> to vector<8x128xi32>
    %19 = arith.sitofp %18 : vector<8x128xi32> to vector<8x128xf32>
    %20 = arith.addf %13, %19 : vector<8x128xf32>
    %c136 = arith.constant 136 : index
    %c0_6 = arith.constant 0 : index
    %21 = vector.load %arg1[%c136, %c0_6] : memref<272x128xf32, #tpu.memory_space<vmem>>, vector<128x128xf32>
    %c264 = arith.constant 264 : index
    %c0_7 = arith.constant 0 : index
    %22 = vector.load %arg1[%c264, %c0_7] : memref<272x128xf32, #tpu.memory_space<vmem>>, vector<1x128xf32>
    %cst_8 = arith.constant dense<0.000000e+00> : vector<8x128xf32>
    %23 = tpu.matmul %20, %21, %cst_8 {dimension_numbers = #tpu.dot_dimension_numbers<[1], [0], [0], [1], [0, 0, 1, 1], [], []>} : vector<8x128xf32>, vector<128x128xf32>, vector<8x128xf32> -> vector<8x128xf32>
    %24 = vector.broadcast %22 : vector<1x128xf32> to vector<8x128xf32>
    %25 = arith.addf %23, %24 : vector<8x128xf32>
    %cst_9 = arith.constant dense<0xFF800000> : vector<8xf32>
    %26 = vector.multi_reduction <maximumf>, %25, %cst_9 [1] : vector<8x128xf32> to vector<8xf32>
    %27 = vector.shape_cast %26 : vector<8xf32> to vector<8x1xf32>
    %28 = vector.broadcast %27 : vector<8x1xf32> to vector<8x128xf32>
    %29 = arith.subf %25, %28 : vector<8x128xf32>
    %30 = math.exp %29 : vector<8x128xf32>
    %cst_10 = arith.constant dense<0.000000e+00> : vector<8xf32>
    %31 = vector.multi_reduction <add>, %30, %cst_10 [1] : vector<8x128xf32> to vector<8xf32>
    %32 = vector.shape_cast %31 : vector<8xf32> to vector<8x1xf32>
    %33 = tpu.reciprocal %32 : vector<8x1xf32> -> vector<8x1xf32>
    %34 = vector.broadcast %33 : vector<8x1xf32> to vector<8x128xf32>
    %35 = arith.mulf %30, %34 : vector<8x128xf32>
    %36 = vector.broadcast %27 : vector<8x1xf32> to vector<8x128xf32>
    %37 = arith.cmpf oeq, %25, %36 : vector<8x128xf32>
    %c128_i32 = arith.constant 128 : i32
    %38 = vector.broadcast %c128_i32 : i32 to vector<8x128xi32>
    %39 = arith.select %37, %1, %38 : vector<8x128xi1>, vector<8x128xi32>
    %cst_11 = arith.constant dense<2147483647> : vector<8xi32>
    %40 = vector.multi_reduction <minsi>, %39, %cst_11 [1] : vector<8x128xi32> to vector<8xi32>
    %41 = vector.shape_cast %40 : vector<8xi32> to vector<8x1xi32>
    %42 = arith.sitofp %41 : vector<8x1xi32> to vector<8x1xf32>
    %c5_i32 = arith.constant 5 : i32
    %43 = vector.broadcast %c5_i32 : i32 to vector<8x128xi32>
    %44 = arith.cmpi eq, %1, %43 : vector<8x128xi32>
    %45 = vector.shape_cast %42 : vector<8x1xf32> to vector<8x1xf32>
    %46 = vector.broadcast %45 : vector<8x1xf32> to vector<8x128xf32>
    %47 = arith.select %44, %46, %35 : vector<8x128xi1>, vector<8x128xf32>
    %c0_12 = arith.constant 0 : index
    %c0_13 = arith.constant 0 : index
    %48 = vector.load %arg2[%c0_12, %c0_13] : memref<8x128xf32, #tpu.memory_space<vmem>>, vector<8x128xf32>
    tpu.vector_store %arg2[%c0_12, %c0_13], %47 {strides = array<i32>} : memref<8x128xf32, #tpu.memory_space<vmem>>, vector<8x128xf32>,
    return
  }
}

</mosaic_0001>

<llo_original>
// kernel: neural_classifier_forward.1
$region0: #{neural_classifier_forward.1}
  #allocation0 [shape = 'u32[]', space=smem, size = 0x4, offset = 0x4, fixed_abs, tag = 'smem constant byte address 0x4 - core index']
  #allocation1 [shape = 'u32[144,128]{1,0:T(1,128)}', space=vmem, size = 0x12000, scoped, tag = 'internal scratch']
  %s0 = inlined_call_operand.vmem [shape: f32[8,128], index: 0, kind: input, shape index: {}]
  %s1 = inlined_call_operand.hbm [shape: f32[272,128], index: 1, kind: input, shape index: {}]
  %s2 = inlined_call_operand.vmem [shape: f32[8,128], index: 2, kind: output, shape index: {}]
  %s3 = sld [smem:[#allocation0]]
  $region22: #{neural_classifier_forward.1} parent=0
    _
  %s5 = ssub.s32 1, %s3
  %s6 = scalar_select 0, %s5, %s3
  $region1: #{neural_classifier_forward.1} parent=0
    #allocation2 [shape = 'u8[139264]{0}', space=vmem, size = 0x22000, scoped, tag = 'input window, operand 1, single buffered']
    #allocation3 [shape = 's32[1]{0}', space=sflag, size = 0x4, scoped, tag = 'scoped memory for neural_classifier_forward.1']
    %7 = vsyncpa [#allocation3], 0
    // Predicated region
    $region2: #{neural_classifier_forward.1} parent=1 // pred_check
      _
    $region3: #{neural_classifier_forward.1} parent=1 // pred_check_branch
      %9 = sbr.rel (0) target = $region5
    $region4: #{neural_classifier_forward.1} parent=1 // pred_region
      _
    $region5: #{neural_classifier_forward.1} parent=1 // pred_fallthru
      _
    // Predicated region
    $region6: #{neural_classifier_forward.1} parent=1 // pred_check
      _
    $region7: #{neural_classifier_forward.1} parent=1 // pred_check_branch
      %11 = sbr.rel (0) target = $region9
    $region8: #{neural_classifier_forward.1} parent=1 // pred_region
      %s13 = ssub.s32 4352, 4352
      %14 = vsyncadd [#allocation3], %s13
      %s15 = sshll.u32 [#allocation2], 4
      %s16 = int_to_ptr.vmem [resolvable:$true] %s15
      %21 = dma.hbm_to_vmem [thread:$0]  %s1, 4352, %s16, [#allocation3], 128, 128, 8
    $region9: #{neural_classifier_forward.1} parent=1 // pred_fallthru
      _
    // Predicated region
    $region10: #{neural_classifier_forward.1} parent=1 // pred_check
      _
    $region11: #{neural_classifier_forward.1} parent=1 // pred_check_branch
      %23 = sbr.rel (0) target = $region13
    $region12: #{neural_classifier_forward.1} parent=1 // pred_region
      %24 = dma.done [#allocation3], 4352
    $region13: #{neural_classifier_forward.1} parent=1 // pred_fallthru
      _
    %v25 = vld [vmem:[%s0] sm:$0xff]
    %v26 = vlaneseq
    %v27 = vand.u32 %v26, 127
    %v28 = vcvt.f32.s32.to.zero.pseudo %v25
    %vm29 = vcmp.lt.s32.totalorder %v27, 32
    %v30 = vsel %vm29, %v25, 0.0
    %v31 = vld [vmem:[#allocation2] sm:$0xff]
    %v32 = vld [vmem:[#allocation2 + $0x8] sm:$0xff]
    %v33 = vld [vmem:[#allocation2 + $0x10] sm:$0xff]
    %v34 = vld [vmem:[#allocation2 + $0x18] sm:$0xff]
    %v35 = vld [vmem:[#allocation2 + $0x20] sm:$0xff]
    %v36 = vld [vmem:[#allocation2 + $0x28] sm:$0xff]
    %v37 = vld [vmem:[#allocation2 + $0x30] sm:$0xff]
    %v38 = vld [vmem:[#allocation2 + $0x38] sm:$0xff]
    %v39 = vld [vmem:[#allocation2 + $0x40] sm:$0xff]
    %v40 = vld [vmem:[#allocation2 + $0x48] sm:$0xff]
    %v41 = vld [vmem:[#allocation2 + $0x50] sm:$0xff]
    %v42 = vld [vmem:[#allocation2 + $0x58] sm:$0xff]
    %v43 = vld [vmem:[#allocation2 + $0x60] sm:$0xff]
    %v44 = vld [vmem:[#allocation2 + $0x68] sm:$0xff]
    %v45 = vld [vmem:[#allocation2 + $0x70] sm:$0xff]
    %v46 = vld [vmem:[#allocation2 + $0x78] sm:$0xff]
    %v47 = vld [vmem:[#allocation2 + $0x80] sm:$0x1]
    %v48 = vlaneseq
    %v49 = vshrl.u32 %v48, 7
    %v50 = vsub.s32 0, %v49
    %v51 = vrot.slane %v47, %v50
    %52 = vmatprep.subr.mxu0 0.0
    %53 = vmatpush1.msra.mxu0 %v31
    %54 = vmatprep.subr.mxu0 0.0
    %55 = vmatpush1.msra.mxu0 %v32
    %56 = vmatprep.subr.mxu0 0.0
    %57 = vmatpush1.msra.mxu0 %v33
    %58 = vmatprep.subr.mxu0 0.0
    %59 = vmatpush1.msra.mxu0 %v34
    %60 = vmatprep.subr.mxu0 0.0
    %61 = vmatpush1.msra.mxu0 %v35
    %62 = vmatprep.subr.mxu0 0.0
    %63 = vmatpush1.msra.mxu0 %v36
    %64 = vmatprep.subr.mxu0 0.0
    %65 = vmatpush1.msra.mxu0 %v37
    %66 = vmatprep.subr.mxu0 0.0
    %67 = vmatpush1.msra.mxu0 %v38
    %68 = vmatprep.subr.mxu0 0.0
    %69 = vmatpush1.msra.mxu0 %v39
    %70 = vmatprep.subr.mxu0 0.0
    %71 = vmatpush1.msra.mxu0 %v40
    %72 = vmatprep.subr.mxu0 0.0
    %73 = vmatpush1.msra.mxu0 %v41
    %74 = vmatprep.subr.mxu0 0.0
    %75 = vmatpush1.msra.mxu0 %v42
    %76 = vmatprep.subr.mxu0 0.0
    %77 = vmatpush1.msra.mxu0 %v43
    %78 = vmatprep.subr.mxu0 0.0
    %79 = vmatpush1.msra.mxu0 %v44
    %80 = vmatprep.subr.mxu0 0.0
    %81 = vmatpush1.msra.mxu0 %v45
    %82 = vmatprep.subr.mxu0 0.0
    %83 = vmatpush1.msra.mxu0 %v46
    %84 = vmatprep.subr.mxu0 0.0
    %85 = vmatpush1.msra.mxu0 0.0
    %86 = vmatprep.subr.mxu0 0.0
    %87 = vmatpush1.msra.mxu0 0.0
    %88 = vmatprep.subr.mxu0 0.0
    %89 = vmatpush1.msra.mxu0 0.0
    %90 = vmatprep.subr.mxu0 0.0
    %91 = vmatpush1.msra.mxu0 0.0
    %92 = vmatprep.subr.mxu0 0.0
    %93 = vmatpush1.msra.mxu0 0.0
    %94 = vmatprep.subr.mxu0 0.0
    %95 = vmatpush1.msra.mxu0 0.0
    %96 = vmatprep.subr.mxu0 0.0
    %97 = vmatpush1.msra.mxu0 0.0
    %98 = vmatprep.subr.mxu0 0.0
    %99 = vmatpush1.msra.mxu0 0.0
    %100 = vmatprep.subr.mxu0 0.0
    %101 = vmatpush1.msra.mxu0 0.0
    %102 = vmatprep.subr.mxu0 0.0
    %103 = vmatpush1.msra.mxu0 0.0
    %104 = vmatprep.subr.mxu0 0.0
    %105 = vmatpush1.msra.mxu0 0.0
    %106 = vmatprep.subr.mxu0 0.0
    %107 = vmatpush1.msra.mxu0 0.0
    %108 = vmatprep.subr.mxu0 0.0
    %109 = vmatpush1.msra.mxu0 0.0
    %110 = vmatprep.subr.mxu0 0.0
    %111 = vmatpush1.msra.mxu0 0.0
    %112 = vmatprep.subr.mxu0 0.0
    %113 = vmatpush1.msra.mxu0 0.0
    %114 = vmatprep.subr.mxu0 0.0
    %115 = vmatpush1.msra.mxu0 0.0
    %116 = vmatprep.mubr.f32.mxu0 0.0
    %117 = vmatmul.mubr.f32.gmra.mrb[0].mxu0 %v30
    %v118 = vpop.f32.mrb[0].mxu0
    %v119 = vadd.f32 %v51, %v118
    %v120 = vpop.f32.mrb[0].mxu0
    %121 = vdwg.mxu0
    %v122 = vtanh.pop %v119
    %v123 = vadd.s32 %v28, 32
    %124 = vset.pattern.permute.xlu0 32
    %125 = vperm.xlu0 %124, %v123
    %v126 = vpop.permute.xlu0 %125
    %vm127 = vcmp.eq.s32.totalorder %v27, %v126
    %v128 = vsel %vm127, 1, 0
    %v129 = vcvt.s32.f32 %v128
    %v130 = vadd.f32 %v122, %v129
    %v131 = vld [vmem:[#allocation2 + $0x88] sm:$0xff]
    %v132 = vld [vmem:[#allocation2 + $0x90] sm:$0xff]
    %v133 = vld [vmem:[#allocation2 + $0x98] sm:$0xff]
    %v134 = vld [vmem:[#allocation2 + $0xa0] sm:$0xff]
    %v135 = vld [vmem:[#allocation2 + $0xa8] sm:$0xff]
    %v136 = vld [vmem:[#allocation2 + $0xb0] sm:$0xff]
    %v137 = vld [vmem:[#allocation2 + $0xb8] sm:$0xff]
    %v138 = vld [vmem:[#allocation2 + $0xc0] sm:$0xff]
    %v139 = vld [vmem:[#allocation2 + $0xc8] sm:$0xff]
    %v140 = vld [vmem:[#allocation2 + $0xd0] sm:$0xff]
    %v141 = vld [vmem:[#allocation2 + $0xd8] sm:$0xff]
    %v142 = vld [vmem:[#allocation2 + $0xe0] sm:$0xff]
    %v143 = vld [vmem:[#allocation2 + $0xe8] sm:$0xff]
    %v144 = vld [vmem:[#allocation2 + $0xf0] sm:$0xff]
    %v145 = vld [vmem:[#allocation2 + $0xf8] sm:$0xff]
    %v146 = vld [vmem:[#allocation2 + $0x100] sm:$0xff]
    %v147 = vld [vmem:[#allocation2 + $0x108] sm:$0x1]
    %v148 = vlaneseq
    %v149 = vshrl.u32 %v148, 7
    %v150 = vsub.s32 0, %v149
    %v151 = vrot.slane %v147, %v150
    %152 = vmatprep.subr.mxu0 0.0
    %153 = vmatpush1.msra.mxu0 %v131
    %154 = vmatprep.subr.mxu0 0.0
    %155 = vmatpush1.msra.mxu0 %v132
    %156 = vmatprep.subr.mxu0 0.0
    %157 = vmatpush1.msra.mxu0 %v133
    %158 = vmatprep.subr.mxu0 0.0
    %159 = vmatpush1.msra.mxu0 %v134
    %160 = vmatprep.subr.mxu0 0.0
    %161 = vmatpush1.msra.mxu0 %v135
    %162 = vmatprep.subr.mxu0 0.0
    %163 = vmatpush1.msra.mxu0 %v136
    %164 = vmatprep.subr.mxu0 0.0
    %165 = vmatpush1.msra.mxu0 %v137
    %166 = vmatprep.subr.mxu0 0.0
    %167 = vmatpush1.msra.mxu0 %v138
    %168 = vmatprep.subr.mxu0 0.0
    %169 = vmatpush1.msra.mxu0 %v139
    %170 = vmatprep.subr.mxu0 0.0
    %171 = vmatpush1.msra.mxu0 %v140
    %172 = vmatprep.subr.mxu0 0.0
    %173 = vmatpush1.msra.mxu0 %v141
    %174 = vmatprep.subr.mxu0 0.0
    %175 = vmatpush1.msra.mxu0 %v142
    %176 = vmatprep.subr.mxu0 0.0
    %177 = vmatpush1.msra.mxu0 %v143
    %178 = vmatprep.subr.mxu0 0.0
    %179 = vmatpush1.msra.mxu0 %v144
    %180 = vmatprep.subr.mxu0 0.0
    %181 = vmatpush1.msra.mxu0 %v145
    %182 = vmatprep.subr.mxu0 0.0
    %183 = vmatpush1.msra.mxu0 %v146
    %184 = vmatprep.subr.mxu0 0.0
    %185 = vmatpush1.msra.mxu0 0.0
    %186 = vmatprep.subr.mxu0 0.0
    %187 = vmatpush1.msra.mxu0 0.0
    %188 = vmatprep.subr.mxu0 0.0
    %189 = vmatpush1.msra.mxu0 0.0
    %190 = vmatprep.subr.mxu0 0.0
    %191 = vmatpush1.msra.mxu0 0.0
    %192 = vmatprep.subr.mxu0 0.0
    %193 = vmatpush1.msra.mxu0 0.0
    %194 = vmatprep.subr.mxu0 0.0
    %195 = vmatpush1.msra.mxu0 0.0
    %196 = vmatprep.subr.mxu0 0.0
    %197 = vmatpush1.msra.mxu0 0.0
    %198 = vmatprep.subr.mxu0 0.0
    %199 = vmatpush1.msra.mxu0 0.0
    %200 = vmatprep.subr.mxu0 0.0
    %201 = vmatpush1.msra.mxu0 0.0
    %202 = vmatprep.subr.mxu0 0.0
    %203 = vmatpush1.msra.mxu0 0.0
    %204 = vmatprep.subr.mxu0 0.0
    %205 = vmatpush1.msra.mxu0 0.0
    %206 = vmatprep.subr.mxu0 0.0
    %207 = vmatpush1.msra.mxu0 0.0
    %208 = vmatprep.subr.mxu0 0.0
    %209 = vmatpush1.msra.mxu0 0.0
    %210 = vmatprep.subr.mxu0 0.0
    %211 = vmatpush1.msra.mxu0 0.0
    %212 = vmatprep.subr.mxu0 0.0
    %213 = vmatpush1.msra.mxu0 0.0
    %214 = vmatprep.subr.mxu0 0.0
    %215 = vmatpush1.msra.mxu0 0.0
    %216 = vmatprep.mubr.f32.mxu0 0.0
    %217 = vmatmul.mubr.f32.gmra.mrb[0].mxu0 %v130
    %v218 = vpop.f32.mrb[0].mxu0
    %v219 = vadd.f32 %v151, %v218
    %v220 = vpop.f32.mrb[0].mxu0
    %221 = vdwg.mxu0
    %222 = vmax.xlane.f32.xlu0 %v219
    %v223 = vpop.xlane.xlu0 %222
    %v224 = vsub.f32 %v219, %v223
    %v225 = vmul.f32 %v224, 1.442695
    %v226 = vpow.pop %v225
    %227 = vadd.xlane.f32.xlu0 %v226
    %v228 = vpop.xlane.xlu0 %227
    %v229 = vrcp.pop %v228
    %v230 = vmul.f32 %v226, %v229
    %vm231 = vcmp.eq.f32.partialorder %v219, %v223
    %v232 = vsel %vm231, %v27, 128
    %v233 = vand.u32 %v232, 65535
    %v234 = vshra.s32 %v232, 16
    %v235 = vcvt.s32.f32 %v233
    %v236 = vcvt.s32.f32 %v234
    %237 = vmin.xlane.f32.xlu0 %v236
    %v238 = vpop.xlane.xlu0 %237
    %vm239 = vcmp.eq.f32.partialorder %v236, %v238
    %v240 = vsel %vm239, %v235, inf
    %241 = vmin.xlane.f32.xlu0 %v240
    %v242 = vpop.xlane.xlu0 %241
    %v243 = vcvt.f32.s32 %v242
    %v244 = vcvt.f32.s32 %v238
    %v245 = vshll.u32 %v244, 16
    %v246 = vadd.s32 %v245, %v243
    %v247 = vcvt.s32.f32 %v246
    %vm248 = vcmp.eq.s32.totalorder %v27, 5
    %v249 = vsel %vm248, %v247, %v230
    %250 = vst [vmem:[%s2] sm:$0xff] %v249
    // Predicated region
    $region14: #{neural_classifier_forward.1} parent=1 // pred_check
      _
    $region15: #{neural_classifier_forward.1} parent=1 // pred_check_branch
      %252 = sbr.rel (0) target = $region17
    $region16: #{neural_classifier_forward.1} parent=1 // pred_region
      _
    $region17: #{neural_classifier_forward.1} parent=1 // pred_fallthru
      _
    // Predicated region
    $region18: #{neural_classifier_forward.1} parent=1 // pred_check
      _
    $region19: #{neural_classifier_forward.1} parent=1 // pred_check_branch
      %254 = sbr.rel (0) target = $region21
    $region20: #{neural_classifier_forward.1} parent=1 // pred_region
      _
    $region21: #{neural_classifier_forward.1} parent=1 // pred_fallthru
      _
    %255 = vsyncpa [#allocation3], 1

</llo_original>
